<compile_context>
chip_gen: v5e
topology: v5e:2x2
jax: 0.10.0
libtpu: 0.0.40
codegen_flags: <defaults>
</compile_context>

<pallas_src>
import jax
import jax.numpy as jnp
from jax.experimental import pallas as pl
from jax.experimental.pallas import tpu as pltpu

# ----------------------------- model dims -----------------------------------
B, T = 2, 4              # batch, timesteps
C, H, W = 3, 8, 8        # per-frame channels / spatial
F_OUT = 32               # CNN feature channels (== LSTM input size)
HID = 32                 # LSTM hidden size (4*HID = 128 -> one lane tile)
NUM_CLASSES = 8

HW = H * W               # 64 spatial positions per frame
N_FRAMES = B * T         # 8 frames
NPOS = N_FRAMES * HW     # 512 conv output positions (lane axis of the slab)
K_PAD = 32               # 27 conv-tap rows padded to 32 (MXU contraction dim)
B_PAD = 8                # batch padded to a full sublane tile
LANE = 128               # lane-dense width for all 128-wide weight tiles

# packed weight-slab row offsets (all 8-aligned)
_W_IH, _W_HH, _W_LIN, _W_CONV = 0, 32, 64, 96
_B_LSTM, _B_LIN = 128, 136
_WSLAB_ROWS = 144


# ----------------------------- fused kernel ----------------------------------
def combine_kernel(patches_ref, pool_ref, wslab_ref, out_ref):
    """Fused CNN -> LSTM -> Linear forward; one invocation, all in VMEM.

    patches_ref : (K_PAD, NPOS)      lane-major im2col slab (rows = tap*C + c)
    pool_ref    : (T*B_PAD, NPOS)    constant avg-pool / reorder matrix
    wslab_ref   : (_WSLAB_ROWS, 128) packed weights (see prepare_kernel_params)
    out_ref     : (B_PAD, 128)       lane-dense logits slab
    """
    # ---- static slices of the packed weight slab ----------------------------
    w_ih = wslab_ref[_W_IH:_W_IH + F_OUT, :]               # (32, 128)
    w_hh = wslab_ref[_W_HH:_W_HH + HID, :]                 # (32, 128)
    w_lin = wslab_ref[_W_LIN:_W_LIN + HID, :]              # (32, 128)
    wconv_blk = wslab_ref[_W_CONV:_W_CONV + F_OUT, :]      # (32, 128)
    w9 = wconv_blk[:, :K_PAD]                              # (32, 32) conv taps
    b_conv = wconv_blk[:, K_PAD:K_PAD + 1]                 # (32, 1)
    b_lstm = wslab_ref[_B_LSTM:_B_LSTM + 1, :]             # (1, 128)
    b_lin = wslab_ref[_B_LIN:_B_LIN + 1, :]                # (1, 128)

    # ---- 3x3 conv (pad=1) + bias + ReLU as a single lane-dense MXU pass -----
    # acts[f, n*HW + y*W + x]
    acts = jnp.maximum(
        jnp.dot(w9, patches_ref[...], preferred_element_type=jnp.float32)
        + b_conv, 0.0)                                      # (32, 512)

    # ---- global avg pool + batch-pad + (b,t)->(t,b) reorder: one NT matmul --
    # feat[t*B_PAD + b, f] = mean over HW of acts[f, frame(b,t)] (0 if b >= B)
    feat = jax.lax.dot_general(
        pool_ref[...], acts, (((1,), (1,)), ((), ())),
        preferred_element_type=jnp.float32)                 # (32, 32)

    # ---- LSTM: hoisted input projection + fully-unrolled T=4 recurrence -----
    gates_x = jnp.dot(feat, w_ih,
                      preferred_element_type=jnp.float32) + b_lstm  # (32, 128)

    h = jnp.zeros((B_PAD, HID), jnp.float32)
    c = jnp.zeros((B_PAD, HID), jnp.float32)
    for t in range(T):                                      # static unroll
        gates = gates_x[t * B_PAD:(t + 1) * B_PAD, :] + jnp.dot(
            h, w_hh, preferred_element_type=jnp.float32)    # (8, 128)
        sg = jax.nn.sigmoid(gates)     # lane-dense EUP over all four gates
        tg = jnp.tanh(gates)
        i_g = sg[:, 0 * HID:1 * HID]
        f_g = sg[:, 1 * HID:2 * HID]
        g_g = tg[:, 2 * HID:3 * HID]
        o_g = sg[:, 3 * HID:4 * HID]
        c = f_g * c + i_g * g_g
        h = o_g * jnp.tanh(c)

    # ---- classifier: lane-dense (8, 128) store, columns >= 8 are zero -------
    out_ref[...] = (jnp.dot(h, w_lin, preferred_element_type=jnp.float32)
                    + b_lin)


# ----------------------------- wrapper ---------------------------------------
_VMEM = pl.BlockSpec(memory_space=pltpu.MemorySpace.VMEM)


@jax.jit
def combine_forward(x, kparams):
    """Mirrors Combine.forward.  x: (B, T, C, H, W) f32 -> (B, NUM_CLASSES)."""
    b, t, c, h, w = x.shape
    assert (b, t, c, h, w) == (B, T, C, H, W)

    # Lane-major im2col: patches[(ki*3+kj)*C + cc, n*HW + y*W + xx]
    #                      = x[n, cc, y+ki-1, xx+kj-1]   (zeros at the border)
    xf = x.reshape(N_FRAMES, C, H, W)
    xp = jnp.pad(xf, ((0, 0), (0, 0), (1, 1), (1, 1)))      # (8, 3, 10, 10)
    taps = [xp[:, :, ki:ki + H, kj:kj + W]
            for ki in range(3) for kj in range(3)]           # 9 x (8, 3, 8, 8)
    pat = jnp.stack(taps, axis=0)                            # (9, 8, 3, 8, 8)
    pat = jnp.transpose(pat, (0, 2, 1, 3, 4)).reshape(9 * C, NPOS)  # (27, 512)
    patches = jnp.concatenate(
        [pat, jnp.zeros((K_PAD - 9 * C, NPOS), jnp.float32)], axis=0)  # (32,512)

    logits_pad = pl.pallas_call(
        combine_kernel,
        out_shape=jax.ShapeDtypeStruct((B_PAD, LANE), jnp.float32),
        in_specs=[_VMEM, _VMEM, _VMEM],
        out_specs=_VMEM,
    )(patches, kparams["pool"], kparams["wslab"])

    # activation=False -> `~False` is truthy -> return WITHOUT activation.
    return logits_pad[:b, :NUM_CLASSES]


# ----------------------------- params ----------------------------------------
def init_params(key):
    """Canonical parameters (used directly by the pure-JAX reference)."""
    ks = jax.random.split(key, 7)
    return {
        "w_conv": 0.1 * jax.random.normal(ks[0], (F_OUT, C, 3, 3), jnp.float32),
        "b_conv": 0.1 * jax.random.normal(ks[1], (F_OUT,), jnp.float32),
        # LSTM weights stored (in, 4H) / (H, 4H); gate order i,f,g,o (PyTorch).
        # b_lstm stands for PyTorch's bias_ih + bias_hh summed.
        "w_ih": 0.1 * jax.random.normal(ks[2], (F_OUT, 4 * HID), jnp.float32),
        "w_hh": 0.1 * jax.random.normal(ks[3], (HID, 4 * HID), jnp.float32),
        "b_lstm": 0.1 * jax.random.normal(ks[4], (4 * HID,), jnp.float32),
        "w_lin": 0.1 * jax.random.normal(ks[5], (HID, NUM_CLASSES), jnp.float32),
        "b_lin": 0.1 * jax.random.normal(ks[6], (NUM_CLASSES,), jnp.float32),
    }


def prepare_kernel_params(p):
    """One-time repack of canonical params into kernel-friendly layouts."""
    # conv taps: w9[f, (ki*3+kj)*C + c] = w_conv[f, c, ki, kj]
    w9 = jnp.transpose(p["w_conv"], (0, 2, 3, 1)).reshape(F_OUT, 9 * C)

    # single packed (144, 128) weight slab (3 input DMAs total incl. patches)
    wslab = jnp.zeros((_WSLAB_ROWS, LANE), jnp.float32)
    wslab = wslab.at[_W_IH:_W_IH + F_OUT, :].set(p["w_ih"])
    wslab = wslab.at[_W_HH:_W_HH + HID, :].set(p["w_hh"])
    wslab = wslab.at[_W_LIN:_W_LIN + HID, :NUM_CLASSES].set(p["w_lin"])
    wslab = wslab.at[_W_CONV:_W_CONV + F_OUT, :9 * C].set(w9)
    wslab = wslab.at[_W_CONV:_W_CONV + F_OUT, K_PAD].set(p["b_conv"])
    wslab = wslab.at[_B_LSTM, :].set(p["b_lstm"])
    wslab = wslab.at[_B_LIN, :NUM_CLASSES].set(p["b_lin"])

    # constant pooling matrix: feat row tb = t*B_PAD + b averages frame
    # n = b*T + t; padded batch rows (b >= B) pool nothing.
    tb = jnp.arange(T * B_PAD)
    t_idx, b_idx = tb // B_PAD, tb % B_PAD
    n_tgt = b_idx * T + t_idx
    pos = jnp.arange(NPOS)
    pool = jnp.where(
        (b_idx[:, None] < B) & ((pos[None, :] // HW) == n_tgt[:, None]),
        1.0 / HW, 0.0).astype(jnp.float32)                   # (32, 512)

    return {"wslab": wslab, "pool": pool}


# ----------------------------- pure-JAX reference ----------------------------
def reference_forward(x, params):
    b, t, c, h, w = x.shape
    frames = x.reshape(b * t, c, h, w)
    acts = jax.lax.conv_general_dilated(
        frames, params["w_conv"], window_strides=(1, 1),
        padding=((1, 1), (1, 1)),
        dimension_numbers=("NCHW", "OIHW", "NCHW"))
    acts = jnp.maximum(acts + params["b_conv"].reshape(1, -1, 1, 1), 0.0)
    feat = jnp.mean(acts, axis=(2, 3))                        # (b*t, F_OUT)
    r_in = feat.reshape(b, t, -1)
    hs = jnp.zeros((b, HID), jnp.float32)
    cs = jnp.zeros((b, HID), jnp.float32)
    for step in range(t):
        gates = (r_in[:, step] @ params["w_ih"] + hs @ params["w_hh"]
                 + params["b_lstm"])
        i = jax.nn.sigmoid(gates[:, 0 * HID:1 * HID])
        f = jax.nn.sigmoid(gates[:, 1 * HID:2 * HID])
        g = jnp.tanh(gates[:, 2 * HID:3 * HID])
        o = jax.nn.sigmoid(gates[:, 3 * HID:4 * HID])
        cs = f * cs + i * g
        hs = o * jnp.tanh(cs)
    return hs @ params["w_lin"] + params["b_lin"]


# ----------------------------- main -------------------------------------------
if __name__ == "__main__":
    key = jax.random.PRNGKey(0)
    k_x, k_p = jax.random.split(key)
    x = jax.random.normal(k_x, (B, T, C, H, W), jnp.float32)
    params = init_params(k_p)
    kparams = prepare_kernel_params(params)

    out = combine_forward(x, kparams)
    out = jax.block_until_ready(out)
    assert out.shape == (B, NUM_CLASSES), out.shape

    ref = reference_forward(x, params)
    max_diff = float(jnp.max(jnp.abs(out - ref)))
    assert jnp.allclose(out, ref, atol=2e-3, rtol=2e-3), max_diff

    print("KERNEL_OK")
</pallas_src>

<mosaic_0001>
module attributes {stable_mosaic.version = 11 : i64} {
  func.func @combine_kernel(%arg0: memref<32x512xf32, #tpu.memory_space<vmem>>, %arg1: memref<32x512xf32, #tpu.memory_space<vmem>>, %arg2: memref<144x128xf32, #tpu.memory_space<vmem>>, %arg3: memref<8x128xf32, #tpu.memory_space<vmem>>) attributes {dimension_semantics = [], scalar_prefetch = 0 : i64, scratch_operands = 0 : i64, tpu.core_type = #tpu.core_type<tc>} {
    %c0 = arith.constant 0 : index
    %c0_0 = arith.constant 0 : index
    %0 = vector.load %arg2[%c0, %c0_0] : memref<144x128xf32, #tpu.memory_space<vmem>>, vector<32x128xf32>
    %c32 = arith.constant 32 : index
    %c0_1 = arith.constant 0 : index
    %1 = vector.load %arg2[%c32, %c0_1] : memref<144x128xf32, #tpu.memory_space<vmem>>, vector<32x128xf32>
    %c64 = arith.constant 64 : index
    %c0_2 = arith.constant 0 : index
    %2 = vector.load %arg2[%c64, %c0_2] : memref<144x128xf32, #tpu.memory_space<vmem>>, vector<32x128xf32>
    %c96 = arith.constant 96 : index
    %c0_3 = arith.constant 0 : index
    %3 = vector.load %arg2[%c96, %c0_3] : memref<144x128xf32, #tpu.memory_space<vmem>>, vector<32x128xf32>
    %4 = vector.extract_strided_slice %3 {offsets = [0, 0], sizes = [32, 32], strides = [1, 1]} : vector<32x128xf32> to vector<32x32xf32>
    %5 = vector.extract_strided_slice %3 {offsets = [0, 32], sizes = [32, 1], strides = [1, 1]} : vector<32x128xf32> to vector<32x1xf32>
    %c128 = arith.constant 128 : index
    %c0_4 = arith.constant 0 : index
    %6 = vector.load %arg2[%c128, %c0_4] : memref<144x128xf32, #tpu.memory_space<vmem>>, vector<1x128xf32>
    %c136 = arith.constant 136 : index
    %c0_5 = arith.constant 0 : index
    %7 = vector.load %arg2[%c136, %c0_5] : memref<144x128xf32, #tpu.memory_space<vmem>>, vector<1x128xf32>
    %c0_6 = arith.constant 0 : index
    %c0_7 = arith.constant 0 : index
    %8 = vector.load %arg0[%c0_6, %c0_7] : memref<32x512xf32, #tpu.memory_space<vmem>>, vector<32x512xf32>
    %cst = arith.constant dense<0.000000e+00> : vector<32x512xf32>
    %9 = tpu.matmul %4, %8, %cst {dimension_numbers = #tpu.dot_dimension_numbers<[1], [0], [0], [1], [0, 0, 1, 1], [], []>} : vector<32x32xf32>, vector<32x512xf32>, vector<32x512xf32> -> vector<32x512xf32>
    %10 = vector.broadcast %5 : vector<32x1xf32> to vector<32x512xf32>
    %11 = arith.addf %9, %10 : vector<32x512xf32>
    %cst_8 = arith.constant 0.000000e+00 : f32
    %12 = vector.broadcast %cst_8 : f32 to vector<32x512xf32>
    %13 = arith.maximumf %11, %12 : vector<32x512xf32>
    %c0_9 = arith.constant 0 : index
    %c0_10 = arith.constant 0 : index
    %14 = vector.load %arg1[%c0_9, %c0_10] : memref<32x512xf32, #tpu.memory_space<vmem>>, vector<32x512xf32>
    %cst_11 = arith.constant dense<0.000000e+00> : vector<32x32xf32>
    %15 = tpu.matmul %14, %13, %cst_11 {dimension_numbers = #tpu.dot_dimension_numbers<[1], [1], [0], [0], [0, 0, 1, 0], [], []>} : vector<32x512xf32>, vector<32x512xf32>, vector<32x32xf32> -> vector<32x32xf32>
    %cst_12 = arith.constant dense<0.000000e+00> : vector<32x128xf32>
    %16 = tpu.matmul %15, %0, %cst_12 {dimension_numbers = #tpu.dot_dimension_numbers<[1], [0], [0], [1], [0, 0, 1, 1], [], []>} : vector<32x32xf32>, vector<32x128xf32>, vector<32x128xf32> -> vector<32x128xf32>
    %17 = vector.broadcast %6 : vector<1x128xf32> to vector<32x128xf32>
    %18 = arith.addf %16, %17 : vector<32x128xf32>
    %cst_13 = arith.constant 0.000000e+00 : f32
    %19 = vector.broadcast %cst_13 : f32 to vector<8x32xf32>
    %cst_14 = arith.constant 0.000000e+00 : f32
    %20 = vector.broadcast %cst_14 : f32 to vector<8x32xf32>
    %21 = vector.extract_strided_slice %18 {offsets = [0, 0], sizes = [8, 128], strides = [1, 1]} : vector<32x128xf32> to vector<8x128xf32>
    %cst_15 = arith.constant dense<0.000000e+00> : vector<8x128xf32>
    %22 = tpu.matmul %19, %1, %cst_15 {dimension_numbers = #tpu.dot_dimension_numbers<[1], [0], [0], [1], [0, 0, 1, 1], [], []>} : vector<8x32xf32>, vector<32x128xf32>, vector<8x128xf32> -> vector<8x128xf32>
    %23 = arith.addf %21, %22 : vector<8x128xf32>
    %24 = arith.negf %23 : vector<8x128xf32>
    %25 = math.exp %24 : vector<8x128xf32>
    %cst_16 = arith.constant 1.000000e+00 : f32
    %26 = vector.broadcast %cst_16 : f32 to vector<8x128xf32>
    %27 = arith.addf %26, %25 : vector<8x128xf32>
    %28 = arith.divf %26, %27 : vector<8x128xf32>
    %29 = math.tanh %23 : vector<8x128xf32>
    %30 = vector.extract_strided_slice %28 {offsets = [0, 0], sizes = [8, 32], strides = [1, 1]} : vector<8x128xf32> to vector<8x32xf32>
    %31 = vector.extract_strided_slice %28 {offsets = [0, 32], sizes = [8, 32], strides = [1, 1]} : vector<8x128xf32> to vector<8x32xf32>
    %32 = vector.extract_strided_slice %29 {offsets = [0, 64], sizes = [8, 32], strides = [1, 1]} : vector<8x128xf32> to vector<8x32xf32>
    %33 = vector.extract_strided_slice %28 {offsets = [0, 96], sizes = [8, 32], strides = [1, 1]} : vector<8x128xf32> to vector<8x32xf32>
    %34 = arith.mulf %31, %20 : vector<8x32xf32>
    %35 = arith.mulf %30, %32 : vector<8x32xf32>
    %36 = arith.addf %34, %35 : vector<8x32xf32>
    %37 = math.tanh %36 : vector<8x32xf32>
    %38 = arith.mulf %33, %37 : vector<8x32xf32>
    %39 = vector.extract_strided_slice %18 {offsets = [8, 0], sizes = [8, 128], strides = [1, 1]} : vector<32x128xf32> to vector<8x128xf32>
    %cst_17 = arith.constant dense<0.000000e+00> : vector<8x128xf32>
    %40 = tpu.matmul %38, %1, %cst_17 {dimension_numbers = #tpu.dot_dimension_numbers<[1], [0], [0], [1], [0, 0, 1, 1], [], []>} : vector<8x32xf32>, vector<32x128xf32>, vector<8x128xf32> -> vector<8x128xf32>
    %41 = arith.addf %39, %40 : vector<8x128xf32>
    %42 = arith.negf %41 : vector<8x128xf32>
    %43 = math.exp %42 : vector<8x128xf32>
    %cst_18 = arith.constant 1.000000e+00 : f32
    %44 = vector.broadcast %cst_18 : f32 to vector<8x128xf32>
    %45 = arith.addf %44, %43 : vector<8x128xf32>
    %46 = arith.divf %44, %45 : vector<8x128xf32>
    %47 = math.tanh %41 : vector<8x128xf32>
    %48 = vector.extract_strided_slice %46 {offsets = [0, 0], sizes = [8, 32], strides = [1, 1]} : vector<8x128xf32> to vector<8x32xf32>
    %49 = vector.extract_strided_slice %46 {offsets = [0, 32], sizes = [8, 32], strides = [1, 1]} : vector<8x128xf32> to vector<8x32xf32>
    %50 = vector.extract_strided_slice %47 {offsets = [0, 64], sizes = [8, 32], strides = [1, 1]} : vector<8x128xf32> to vector<8x32xf32>
    %51 = vector.extract_strided_slice %46 {offsets = [0, 96], sizes = [8, 32], strides = [1, 1]} : vector<8x128xf32> to vector<8x32xf32>
    %52 = arith.mulf %49, %36 : vector<8x32xf32>
    %53 = arith.mulf %48, %50 : vector<8x32xf32>
    %54 = arith.addf %52, %53 : vector<8x32xf32>
    %55 = math.tanh %54 : vector<8x32xf32>
    %56 = arith.mulf %51, %55 : vector<8x32xf32>
    %57 = vector.extract_strided_slice %18 {offsets = [16, 0], sizes = [8, 128], strides = [1, 1]} : vector<32x128xf32> to vector<8x128xf32>
    %cst_19 = arith.constant dense<0.000000e+00> : vector<8x128xf32>
    %58 = tpu.matmul %56, %1, %cst_19 {dimension_numbers = #tpu.dot_dimension_numbers<[1], [0], [0], [1], [0, 0, 1, 1], [], []>} : vector<8x32xf32>, vector<32x128xf32>, vector<8x128xf32> -> vector<8x128xf32>
    %59 = arith.addf %57, %58 : vector<8x128xf32>
    %60 = arith.negf %59 : vector<8x128xf32>
    %61 = math.exp %60 : vector<8x128xf32>
    %cst_20 = arith.constant 1.000000e+00 : f32
    %62 = vector.broadcast %cst_20 : f32 to vector<8x128xf32>
    %63 = arith.addf %62, %61 : vector<8x128xf32>
    %64 = arith.divf %62, %63 : vector<8x128xf32>
    %65 = math.tanh %59 : vector<8x128xf32>
    %66 = vector.extract_strided_slice %64 {offsets = [0, 0], sizes = [8, 32], strides = [1, 1]} : vector<8x128xf32> to vector<8x32xf32>
    %67 = vector.extract_strided_slice %64 {offsets = [0, 32], sizes = [8, 32], strides = [1, 1]} : vector<8x128xf32> to vector<8x32xf32>
    %68 = vector.extract_strided_slice %65 {offsets = [0, 64], sizes = [8, 32], strides = [1, 1]} : vector<8x128xf32> to vector<8x32xf32>
    %69 = vector.extract_strided_slice %64 {offsets = [0, 96], sizes = [8, 32], strides = [1, 1]} : vector<8x128xf32> to vector<8x32xf32>
    %70 = arith.mulf %67, %54 : vector<8x32xf32>
    %71 = arith.mulf %66, %68 : vector<8x32xf32>
    %72 = arith.addf %70, %71 : vector<8x32xf32>
    %73 = math.tanh %72 : vector<8x32xf32>
    %74 = arith.mulf %69, %73 : vector<8x32xf32>
    %75 = vector.extract_strided_slice %18 {offsets = [24, 0], sizes = [8, 128], strides = [1, 1]} : vector<32x128xf32> to vector<8x128xf32>
    %cst_21 = arith.constant dense<0.000000e+00> : vector<8x128xf32>
    %76 = tpu.matmul %74, %1, %cst_21 {dimension_numbers = #tpu.dot_dimension_numbers<[1], [0], [0], [1], [0, 0, 1, 1], [], []>} : vector<8x32xf32>, vector<32x128xf32>, vector<8x128xf32> -> vector<8x128xf32>
    %77 = arith.addf %75, %76 : vector<8x128xf32>
    %78 = arith.negf %77 : vector<8x128xf32>
    %79 = math.exp %78 : vector<8x128xf32>
    %cst_22 = arith.constant 1.000000e+00 : f32
    %80 = vector.broadcast %cst_22 : f32 to vector<8x128xf32>
    %81 = arith.addf %80, %79 : vector<8x128xf32>
    %82 = arith.divf %80, %81 : vector<8x128xf32>
    %83 = math.tanh %77 : vector<8x128xf32>
    %84 = vector.extract_strided_slice %82 {offsets = [0, 0], sizes = [8, 32], strides = [1, 1]} : vector<8x128xf32> to vector<8x32xf32>
    %85 = vector.extract_strided_slice %82 {offsets = [0, 32], sizes = [8, 32], strides = [1, 1]} : vector<8x128xf32> to vector<8x32xf32>
    %86 = vector.extract_strided_slice %83 {offsets = [0, 64], sizes = [8, 32], strides = [1, 1]} : vector<8x128xf32> to vector<8x32xf32>
    %87 = vector.extract_strided_slice %82 {offsets = [0, 96], sizes = [8, 32], strides = [1, 1]} : vector<8x128xf32> to vector<8x32xf32>
    %88 = arith.mulf %85, %72 : vector<8x32xf32>
    %89 = arith.mulf %84, %86 : vector<8x32xf32>
    %90 = arith.addf %88, %89 : vector<8x32xf32>
    %91 = math.tanh %90 : vector<8x32xf32>
    %92 = arith.mulf %87, %91 : vector<8x32xf32>
    %cst_23 = arith.constant dense<0.000000e+00> : vector<8x128xf32>
    %93 = tpu.matmul %92, %2, %cst_23 {dimension_numbers = #tpu.dot_dimension_numbers<[1], [0], [0], [1], [0, 0, 1, 1], [], []>} : vector<8x32xf32>, vector<32x128xf32>, vector<8x128xf32> -> vector<8x128xf32>
    %94 = vector.broadcast %7 : vector<1x128xf32> to vector<8x128xf32>
    %95 = arith.addf %93, %94 : vector<8x128xf32>
    %c0_24 = arith.constant 0 : index
    %c0_25 = arith.constant 0 : index
    %96 = vector.load %arg3[%c0_24, %c0_25] : memref<8x128xf32, #tpu.memory_space<vmem>>, vector<8x128xf32>
    tpu.vector_store %arg3[%c0_24, %c0_25], %95 {strides = array<i32>} : memref<8x128xf32, #tpu.memory_space<vmem>>, vector<8x128xf32>,
    return
  }
}

</mosaic_0001>

<llo_original>
// kernel: combine_forward.1
$region0: #{combine_forward.1}
  #allocation0 [shape = 'u32[]', space=smem, size = 0x4, offset = 0x4, fixed_abs, tag = 'smem constant byte address 0x4 - core index']
  #allocation1 [shape = 'u32[72,128]{1,0:T(1,128)}', space=vmem, size = 0x9000, scoped, tag = 'internal scratch']
  %s0 = inlined_call_operand.vmem [shape: f32[32,512], index: 0, kind: input, shape index: {}]
  %s1 = inlined_call_operand.vmem [shape: f32[32,512], index: 1, kind: input, shape index: {}]
  %s2 = inlined_call_operand.vmem [shape: f32[144,128], index: 2, kind: input, shape index: {}]
  %s3 = inlined_call_operand.vmem [shape: f32[8,128], index: 3, kind: output, shape index: {}]
  %s4 = sld [smem:[#allocation0]]
  $region22: #{combine_forward.1} parent=0
    _
  %s6 = ssub.s32 1, %s4
  %s7 = scalar_select 0, %s6, %s4
  // Predicated region
  $region2: #{combine_forward.1} parent=0 // pred_check
    _
  $region3: #{combine_forward.1} parent=0 // pred_check_branch
    %9 = sbr.rel (0) target = $region5
  $region4: #{combine_forward.1} parent=0 // pred_region
    _
  $region5: #{combine_forward.1} parent=0 // pred_fallthru
    _
  // Predicated region
  $region6: #{combine_forward.1} parent=0 // pred_check
    _
  $region7: #{combine_forward.1} parent=0 // pred_check_branch
    %11 = sbr.rel (0) target = $region9
  $region8: #{combine_forward.1} parent=0 // pred_region
    _
  $region9: #{combine_forward.1} parent=0 // pred_fallthru
    _
  // Predicated region
  $region10: #{combine_forward.1} parent=0 // pred_check
    _
  $region11: #{combine_forward.1} parent=0 // pred_check_branch
    %13 = sbr.rel (0) target = $region13
  $region12: #{combine_forward.1} parent=0 // pred_region
    _
  $region13: #{combine_forward.1} parent=0 // pred_fallthru
    _
  %v14 = vld [vmem:[%s2] sm:$0xff]
  %v15 = vld [vmem:[%s2 + $0x8] sm:$0xff]
  %v16 = vld [vmem:[%s2 + $0x10] sm:$0xff]
  %v17 = vld [vmem:[%s2 + $0x18] sm:$0xff]
  %v18 = vld [vmem:[%s2 + $0x20] sm:$0xff]
  %v19 = vld [vmem:[%s2 + $0x28] sm:$0xff]
  %v20 = vld [vmem:[%s2 + $0x30] sm:$0xff]
  %v21 = vld [vmem:[%s2 + $0x38] sm:$0xff]
  %v22 = vld [vmem:[%s2 + $0x40] sm:$0xff]
  %v23 = vld [vmem:[%s2 + $0x48] sm:$0xff]
  %v24 = vld [vmem:[%s2 + $0x50] sm:$0xff]
  %v25 = vld [vmem:[%s2 + $0x58] sm:$0xff]
  %v26 = vld [vmem:[%s2 + $0x60] sm:$0xff]
  %v27 = vld [vmem:[%s2 + $0x68] sm:$0xff]
  %v28 = vld [vmem:[%s2 + $0x70] sm:$0xff]
  %v29 = vld [vmem:[%s2 + $0x78] sm:$0xff]
  %v30 = vld [vmem:[%s2 + $0x80] sm:$0x1]
  %v31 = vld [vmem:[%s2 + $0x88] sm:$0x1]
  %v32 = vld [vmem:[%s0] sm:$0xff]
  %v33 = vld [vmem:[%s0 + $0x8] sm:$0xff]
  %v34 = vld [vmem:[%s0 + $0x10] sm:$0xff]
  %v35 = vld [vmem:[%s0 + $0x18] sm:$0xff]
  %v36 = vld [vmem:[%s0 + $0x20] sm:$0xff]
  %v37 = vld [vmem:[%s0 + $0x28] sm:$0xff]
  %v38 = vld [vmem:[%s0 + $0x30] sm:$0xff]
  %v39 = vld [vmem:[%s0 + $0x38] sm:$0xff]
  %v40 = vld [vmem:[%s0 + $0x40] sm:$0xff]
  %v41 = vld [vmem:[%s0 + $0x48] sm:$0xff]
  %v42 = vld [vmem:[%s0 + $0x50] sm:$0xff]
  %v43 = vld [vmem:[%s0 + $0x58] sm:$0xff]
  %v44 = vld [vmem:[%s0 + $0x60] sm:$0xff]
  %v45 = vld [vmem:[%s0 + $0x68] sm:$0xff]
  %v46 = vld [vmem:[%s0 + $0x70] sm:$0xff]
  %v47 = vld [vmem:[%s0 + $0x78] sm:$0xff]
  %49 = vset.pattern.permute.xlu0 32
  %50 = vperm.xlu0 %49, %v26
  %v51 = vpop.permute.xlu0 %50
  %54 = vset.pattern.permute.xlu0 32
  %55 = vperm.xlu0 %54, %v27
  %v56 = vpop.permute.xlu0 %55
  %59 = vset.pattern.permute.xlu0 32
  %60 = vperm.xlu0 %59, %v28
  %v61 = vpop.permute.xlu0 %60
  %64 = vset.pattern.permute.xlu0 32
  %65 = vperm.xlu0 %64, %v29
  %v66 = vpop.permute.xlu0 %65
  %vm68 = vcmask 261120
  %v69 = vsel %vm68, %v26, 0
  %v71 = vsel %vm68, %v27, 0
  %v73 = vsel %vm68, %v28, 0
  %v75 = vsel %vm68, %v29, 0
  %77 = vmatpush.msra.mxu0 0.0
  %78 = vmatpush.msra.mxu0 0.0
  %79 = vmatpush.msra.mxu0 0.0
  %80 = vmatpush.msra.mxu0 0.0
  %81 = vmatpush.msra.mxu0 0.0
  %82 = vmatpush.msra.mxu0 0.0
  %83 = vmatpush.msra.mxu0 0.0
  %84 = vmatpush.msra.mxu0 0.0
  %85 = vmatpush.msra.mxu0 0.0
  %86 = vmatpush.msra.mxu0 0.0
  %87 = vmatpush.msra.mxu0 0.0
  %88 = vmatpush.msra.mxu0 0.0
  %89 = vmatpush.msra.mxu0 %v44
  %90 = vmatpush.msra.mxu0 %v40
  %91 = vmatpush.msra.mxu0 %v36
  %92 = vmatpush.msra.mxu0 %v32
  %93 = vmatmul.f32.gmra.mxu0 %v69
  %v94 = vpop.f32.mrf.mxu0
  %v95 = vadd.f32 %v51, %v94
  %96 = vmatmul.f32.gmra.mxu0 %v71
  %v97 = vpop.f32.mrf.mxu0
  %v98 = vadd.f32 %v56, %v97
  %99 = vmatmul.f32.gmra.mxu0 %v73
  %v100 = vpop.f32.mrf.mxu0
  %v101 = vadd.f32 %v61, %v100
  %102 = vmatmul.f32.gmra.mxu0 %v75
  %v103 = vpop.f32.mrf.mxu0
  %v104 = vadd.f32 %v66, %v103
  %105 = vdwg.mxu0
  %106 = vmatpush.msra.mxu0 0.0
  %107 = vmatpush.msra.mxu0 0.0
  %108 = vmatpush.msra.mxu0 0.0
  %109 = vmatpush.msra.mxu0 0.0
  %110 = vmatpush.msra.mxu0 0.0
  %111 = vmatpush.msra.mxu0 0.0
  %112 = vmatpush.msra.mxu0 0.0
  %113 = vmatpush.msra.mxu0 0.0
  %114 = vmatpush.msra.mxu0 0.0
  %115 = vmatpush.msra.mxu0 0.0
  %116 = vmatpush.msra.mxu0 0.0
  %117 = vmatpush.msra.mxu0 0.0
  %118 = vmatpush.msra.mxu0 %v45
  %119 = vmatpush.msra.mxu0 %v41
  %120 = vmatpush.msra.mxu0 %v37
  %121 = vmatpush.msra.mxu0 %v33
  %122 = vmatmul.f32.gmra.mxu0 %v69
  %v123 = vpop.f32.mrf.mxu0
  %v124 = vadd.f32 %v51, %v123
  %125 = vmatmul.f32.gmra.mxu0 %v71
  %v126 = vpop.f32.mrf.mxu0
  %v127 = vadd.f32 %v56, %v126
  %128 = vmatmul.f32.gmra.mxu0 %v73
  %v129 = vpop.f32.mrf.mxu0
  %v130 = vadd.f32 %v61, %v129
  %131 = vmatmul.f32.gmra.mxu0 %v75
  %v132 = vpop.f32.mrf.mxu0
  %v133 = vadd.f32 %v66, %v132
  %134 = vdwg.mxu0
  %135 = vmatpush.msra.mxu0 0.0
  %136 = vmatpush.msra.mxu0 0.0
  %137 = vmatpush.msra.mxu0 0.0
  %138 = vmatpush.msra.mxu0 0.0
  %139 = vmatpush.msra.mxu0 0.0
  %140 = vmatpush.msra.mxu0 0.0
  %141 = vmatpush.msra.mxu0 0.0
  %142 = vmatpush.msra.mxu0 0.0
  %143 = vmatpush.msra.mxu0 0.0
  %144 = vmatpush.msra.mxu0 0.0
  %145 = vmatpush.msra.mxu0 0.0
  %146 = vmatpush.msra.mxu0 0.0
  %147 = vmatpush.msra.mxu0 %v46
  %148 = vmatpush.msra.mxu0 %v42
  %149 = vmatpush.msra.mxu0 %v38
  %150 = vmatpush.msra.mxu0 %v34
  %151 = vmatmul.f32.gmra.mxu0 %v69
  %v152 = vpop.f32.mrf.mxu0
  %v153 = vadd.f32 %v51, %v152
  %154 = vmatmul.f32.gmra.mxu0 %v71
  %v155 = vpop.f32.mrf.mxu0
  %v156 = vadd.f32 %v56, %v155
  %157 = vmatmul.f32.gmra.mxu0 %v73
  %v158 = vpop.f32.mrf.mxu0
  %v159 = vadd.f32 %v61, %v158
  %160 = vmatmul.f32.gmra.mxu0 %v75
  %v161 = vpop.f32.mrf.mxu0
  %v162 = vadd.f32 %v66, %v161
  %163 = vdwg.mxu0
  %164 = vmatpush.msra.mxu0 0.0
  %165 = vmatpush.msra.mxu0 0.0
  %166 = vmatpush.msra.mxu0 0.0
  %167 = vmatpush.msra.mxu0 0.0
  %168 = vmatpush.msra.mxu0 0.0
  %169 = vmatpush.msra.mxu0 0.0
  %170 = vmatpush.msra.mxu0 0.0
  %171 = vmatpush.msra.mxu0 0.0
  %172 = vmatpush.msra.mxu0 0.0
  %173 = vmatpush.msra.mxu0 0.0
  %174 = vmatpush.msra.mxu0 0.0
  %175 = vmatpush.msra.mxu0 0.0
  %176 = vmatpush.msra.mxu0 %v47
  %177 = vmatpush.msra.mxu0 %v43
  %178 = vmatpush.msra.mxu0 %v39
  %179 = vmatpush.msra.mxu0 %v35
  %180 = vmatmul.f32.gmra.mxu0 %v69
  %v181 = vpop.f32.mrf.mxu0
  %v182 = vadd.f32 %v51, %v181
  %183 = vmatmul.f32.gmra.mxu0 %v71
  %v184 = vpop.f32.mrf.mxu0
  %v185 = vadd.f32 %v56, %v184
  %186 = vmatmul.f32.gmra.mxu0 %v73
  %v187 = vpop.f32.mrf.mxu0
  %v188 = vadd.f32 %v61, %v187
  %189 = vmatmul.f32.gmra.mxu0 %v75
  %v190 = vpop.f32.mrf.mxu0
  %v191 = vadd.f32 %v66, %v190
  %192 = vdwg.mxu0
  %v193 = vmax.f32 %v95, 0.0
  %v194 = vmax.f32 %v124, 0.0
  %v195 = vmax.f32 %v153, 0.0
  %v196 = vmax.f32 %v182, 0.0
  %v197 = vmax.f32 %v98, 0.0
  %v198 = vmax.f32 %v127, 0.0
  %v199 = vmax.f32 %v156, 0.0
  %v200 = vmax.f32 %v185, 0.0
  %v201 = vmax.f32 %v101, 0.0
  %v202 = vmax.f32 %v130, 0.0
  %v203 = vmax.f32 %v159, 0.0
  %v204 = vmax.f32 %v188, 0.0
  %v205 = vmax.f32 %v104, 0.0
  %v206 = vmax.f32 %v133, 0.0
  %v207 = vmax.f32 %v162, 0.0
  %v208 = vmax.f32 %v191, 0.0
  %v209 = vld [vmem:[%s1] sm:$0xff]
  %v210 = vld [vmem:[%s1 + $0x8] sm:$0xff]
  %v211 = vld [vmem:[%s1 + $0x10] sm:$0xff]
  %v212 = vld [vmem:[%s1 + $0x18] sm:$0xff]
  %v213 = vld [vmem:[%s1 + $0x20] sm:$0xff]
  %v214 = vld [vmem:[%s1 + $0x28] sm:$0xff]
  %v215 = vld [vmem:[%s1 + $0x30] sm:$0xff]
  %v216 = vld [vmem:[%s1 + $0x38] sm:$0xff]
  %v217 = vld [vmem:[%s1 + $0x40] sm:$0xff]
  %v218 = vld [vmem:[%s1 + $0x48] sm:$0xff]
  %v219 = vld [vmem:[%s1 + $0x50] sm:$0xff]
  %v220 = vld [vmem:[%s1 + $0x58] sm:$0xff]
  %v221 = vld [vmem:[%s1 + $0x60] sm:$0xff]
  %v222 = vld [vmem:[%s1 + $0x68] sm:$0xff]
  %v223 = vld [vmem:[%s1 + $0x70] sm:$0xff]
  %v224 = vld [vmem:[%s1 + $0x78] sm:$0xff]
  %225 = vmatpush.xpose.msra.mxu0 0.0
  %226 = vmatpush.xpose.msra.mxu0 0.0
  %227 = vmatpush.xpose.msra.mxu0 0.0
  %228 = vmatpush.xpose.msra.mxu0 0.0
  %229 = vmatpush.xpose.msra.mxu0 0.0
  %230 = vmatpush.xpose.msra.mxu0 0.0
  %231 = vmatpush.xpose.msra.mxu0 0.0
  %232 = vmatpush.xpose.msra.mxu0 0.0
  %233 = vmatpush.xpose.msra.mxu0 0.0
  %234 = vmatpush.xpose.msra.mxu0 0.0
  %235 = vmatpush.xpose.msra.mxu0 0.0
  %236 = vmatpush.xpose.msra.mxu0 0.0
  %237 = vmatpush.xpose.msra.mxu0 %v205
  %238 = vmatpush.xpose.msra.mxu0 %v201
  %239 = vmatpush.xpose.msra.mxu0 %v197
  %240 = vmatpush.xpose.msra.mxu0 %v193
  %241 = vmatmul.f32.gmra.mxu0 %v209
  %v242 = vpop.f32.mrf.mxu0
  %v243 = vadd.f32 0.0, %v242
  %244 = vmatmul.f32.gmra.mxu0 %v213
  %v245 = vpop.f32.mrf.mxu0
  %v246 = vadd.f32 0.0, %v245
  %247 = vmatmul.f32.gmra.mxu0 %v217
  %v248 = vpop.f32.mrf.mxu0
  %v249 = vadd.f32 0.0, %v248
  %250 = vmatmul.f32.gmra.mxu0 %v221
  %v251 = vpop.f32.mrf.mxu0
  %v252 = vadd.f32 0.0, %v251
  %253 = vdwg.mxu0
  %254 = vmatpush.xpose.msra.mxu0 0.0
  %255 = vmatpush.xpose.msra.mxu0 0.0
  %256 = vmatpush.xpose.msra.mxu0 0.0
  %257 = vmatpush.xpose.msra.mxu0 0.0
  %258 = vmatpush.xpose.msra.mxu0 0.0
  %259 = vmatpush.xpose.msra.mxu0 0.0
  %260 = vmatpush.xpose.msra.mxu0 0.0
  %261 = vmatpush.xpose.msra.mxu0 0.0
  %262 = vmatpush.xpose.msra.mxu0 0.0
  %263 = vmatpush.xpose.msra.mxu0 0.0
  %264 = vmatpush.xpose.msra.mxu0 0.0
  %265 = vmatpush.xpose.msra.mxu0 0.0
  %266 = vmatpush.xpose.msra.mxu0 %v206
  %267 = vmatpush.xpose.msra.mxu0 %v202
  %268 = vmatpush.xpose.msra.mxu0 %v198
  %269 = vmatpush.xpose.msra.mxu0 %v194
  %270 = vmatmul.f32.gmra.mxu0 %v210
  %v271 = vpop.f32.mrf.mxu0
  %v272 = vadd.f32 %v243, %v271
  %273 = vmatmul.f32.gmra.mxu0 %v214
  %v274 = vpop.f32.mrf.mxu0
  %v275 = vadd.f32 %v246, %v274
  %276 = vmatmul.f32.gmra.mxu0 %v218
  %v277 = vpop.f32.mrf.mxu0
  %v278 = vadd.f32 %v249, %v277
  %279 = vmatmul.f32.gmra.mxu0 %v222
  %v280 = vpop.f32.mrf.mxu0
  %v281 = vadd.f32 %v252, %v280
  %282 = vdwg.mxu0
  %283 = vmatpush.xpose.msra.mxu0 0.0
  %284 = vmatpush.xpose.msra.mxu0 0.0
  %285 = vmatpush.xpose.msra.mxu0 0.0
  %286 = vmatpush.xpose.msra.mxu0 0.0
  %287 = vmatpush.xpose.msra.mxu0 0.0
  %288 = vmatpush.xpose.msra.mxu0 0.0
  %289 = vmatpush.xpose.msra.mxu0 0.0
  %290 = vmatpush.xpose.msra.mxu0 0.0
  %291 = vmatpush.xpose.msra.mxu0 0.0
  %292 = vmatpush.xpose.msra.mxu0 0.0
  %293 = vmatpush.xpose.msra.mxu0 0.0
  %294 = vmatpush.xpose.msra.mxu0 0.0
  %295 = vmatpush.xpose.msra.mxu0 %v207
  %296 = vmatpush.xpose.msra.mxu0 %v203
  %297 = vmatpush.xpose.msra.mxu0 %v199
  %298 = vmatpush.xpose.msra.mxu0 %v195
  %299 = vmatmul.f32.gmra.mxu0 %v211
  %v300 = vpop.f32.mrf.mxu0
  %v301 = vadd.f32 %v272, %v300
  %302 = vmatmul.f32.gmra.mxu0 %v215
  %v303 = vpop.f32.mrf.mxu0
  %v304 = vadd.f32 %v275, %v303
  %305 = vmatmul.f32.gmra.mxu0 %v219
  %v306 = vpop.f32.mrf.mxu0
  %v307 = vadd.f32 %v278, %v306
  %308 = vmatmul.f32.gmra.mxu0 %v223
  %v309 = vpop.f32.mrf.mxu0
  %v310 = vadd.f32 %v281, %v309
  %311 = vdwg.mxu0
  %312 = vmatpush.xpose.msra.mxu0 0.0
  %313 = vmatpush.xpose.msra.mxu0 0.0
  %314 = vmatpush.xpose.msra.mxu0 0.0
  %315 = vmatpush.xpose.msra.mxu0 0.0
  %316 = vmatpush.xpose.msra.mxu0 0.0
  %317 = vmatpush.xpose.msra.mxu0 0.0
  %318 = vmatpush.xpose.msra.mxu0 0.0
  %319 = vmatpush.xpose.msra.mxu0 0.0
  %320 = vmatpush.xpose.msra.mxu0 0.0
  %321 = vmatpush.xpose.msra.mxu0 0.0
  %322 = vmatpush.xpose.msra.mxu0 0.0
  %323 = vmatpush.xpose.msra.mxu0 0.0
  %324 = vmatpush.xpose.msra.mxu0 %v208
  %325 = vmatpush.xpose.msra.mxu0 %v204
  %326 = vmatpush.xpose.msra.mxu0 %v200
  %327 = vmatpush.xpose.msra.mxu0 %v196
  %328 = vmatmul.f32.gmra.mxu0 %v212
  %v329 = vpop.f32.mrf.mxu0
  %v330 = vadd.f32 %v301, %v329
  %331 = vmatmul.f32.gmra.mxu0 %v216
  %v332 = vpop.f32.mrf.mxu0
  %v333 = vadd.f32 %v304, %v332
  %334 = vmatmul.f32.gmra.mxu0 %v220
  %v335 = vpop.f32.mrf.mxu0
  %v336 = vadd.f32 %v307, %v335
  %337 = vmatmul.f32.gmra.mxu0 %v224
  %v338 = vpop.f32.mrf.mxu0
  %v339 = vadd.f32 %v310, %v338
  %340 = vdwg.mxu0
  %v341 = vperm.slane %v30, 0
  %v343 = vsel %vm68, %v330, 0
  %v346 = vsel %vm68, %v333, 0
  %v349 = vsel %vm68, %v336, 0
  %v352 = vsel %vm68, %v339, 0
  %354 = vmatpush.msra.mxu0 0.0
  %355 = vmatpush.msra.mxu0 0.0
  %356 = vmatpush.msra.mxu0 0.0
  %357 = vmatpush.msra.mxu0 0.0
  %358 = vmatpush.msra.mxu0 0.0
  %359 = vmatpush.msra.mxu0 0.0
  %360 = vmatpush.msra.mxu0 0.0
  %361 = vmatpush.msra.mxu0 0.0
  %362 = vmatpush.msra.mxu0 0.0
  %363 = vmatpush.msra.mxu0 0.0
  %364 = vmatpush.msra.mxu0 0.0
  %365 = vmatpush.msra.mxu0 0.0
  %366 = vmatpush.msra.mxu0 %v17
  %367 = vmatpush.msra.mxu0 %v16
  %368 = vmatpush.msra.mxu0 %v15
  %369 = vmatpush.msra.mxu0 %v14
  %370 = vmatmul.f32.gmra.mxu0 %v343
  %v371 = vpop.f32.mrf.mxu0
  %v372 = vadd.f32 %v341, %v371
  %373 = vmatmul.f32.gmra.mxu0 %v346
  %v374 = vpop.f32.mrf.mxu0
  %v375 = vadd.f32 %v341, %v374
  %376 = vmatmul.f32.gmra.mxu0 %v349
  %v377 = vpop.f32.mrf.mxu0
  %v378 = vadd.f32 %v341, %v377
  %379 = vmatmul.f32.gmra.mxu0 %v352
  %v380 = vpop.f32.mrf.mxu0
  %v381 = vadd.f32 %v341, %v380
  %382 = vdwg.mxu0
  %v384 = vsel %vm68, 0.0, 0
  %386 = vmatpush.msra.mxu0 0.0
  %387 = vmatpush.msra.mxu0 0.0
  %388 = vmatpush.msra.mxu0 0.0
  %389 = vmatpush.msra.mxu0 0.0
  %390 = vmatpush.msra.mxu0 0.0
  %391 = vmatpush.msra.mxu0 0.0
  %392 = vmatpush.msra.mxu0 0.0
  %393 = vmatpush.msra.mxu0 0.0
  %394 = vmatpush.msra.mxu0 0.0
  %395 = vmatpush.msra.mxu0 0.0
  %396 = vmatpush.msra.mxu0 0.0
  %397 = vmatpush.msra.mxu0 0.0
  %398 = vmatpush.msra.mxu0 %v21
  %399 = vmatpush.msra.mxu0 %v20
  %400 = vmatpush.msra.mxu0 %v19
  %401 = vmatpush.msra.mxu0 %v18
  %402 = vmatmul.f32.gmra.mxu0 %v384
  %v403 = vpop.f32.mrf.mxu0
  %v404 = vadd.f32 0.0, %v403
  %405 = vdwg.mxu0
  %v406 = vadd.f32 %v372, %v404
  %v407 = vxor.u32 %v406, 2147483648
  %v408 = vmul.f32 %v407, 1.442695
  %v409 = vpow.pop %v408
  %v410 = vadd.f32 %v409, 1.0
  %v411 = vrcp.pop %v410
  %v412 = vmul.f32 %v410, %v411
  %v413 = vsub.f32 1.0, %v412
  %v414 = vmul.f32 %v411, %v413
  %v415 = vadd.f32 %v411, %v414
  %vm416 = vweird.f32 %v410
  %vm417 = vweird.f32 %v411
  %vm418 = vmor %vm416, %vm417
  %v419 = vsel %vm418, %v411, %v415
  %v420 = vand.u32 2147483647, %v410
  %vm421 = vcmp.eq.f32.partialorder %v420, 8.507059e+37
  %v422 = vand.u32 %v410, 2147483648
  %v423 = vor.u32 1.1754944e-38, %v422
  %v424 = vsel %vm421, %v423, %v419
  %v425 = vmul.f32 1.0, %v424
  %v426 = vtanh.pop %v406
  %v427 = vmul.f32 %v425, 0.0
  %429 = vrot.lane.b32.xlu0 %v426, 64
  %v430 = vpop.permute.xlu0 %429
  %v432 = vmul.f32 %v425, %v430
  %434 = vrot.lane.b32.xlu0 %v432, 32
  %v435 = vpop.permute.xlu0 %434
  %v437 = vadd.f32 %v427, %v435
  %v438 = vtanh.pop %v437
  %440 = vrot.lane.b32.xlu0 %v438, 64
  %v441 = vpop.permute.xlu0 %440
  %v443 = vmul.f32 %v425, %v441
  %445 = vrot.lane.b32.xlu0 %v443, 32
  %v446 = vpop.permute.xlu0 %445
  %v447 = vsel %vm68, %v446, 0
  %449 = vmatpush.msra.mxu0 0.0
  %450 = vmatpush.msra.mxu0 0.0
  %451 = vmatpush.msra.mxu0 0.0
  %452 = vmatpush.msra.mxu0 0.0
  %453 = vmatpush.msra.mxu0 0.0
  %454 = vmatpush.msra.mxu0 0.0
  %455 = vmatpush.msra.mxu0 0.0
  %456 = vmatpush.msra.mxu0 0.0
  %457 = vmatpush.msra.mxu0 0.0
  %458 = vmatpush.msra.mxu0 0.0
  %459 = vmatpush.msra.mxu0 0.0
  %460 = vmatpush.msra.mxu0 0.0
  %461 = vmatpush.msra.mxu0 %v21
  %462 = vmatpush.msra.mxu0 %v20
  %463 = vmatpush.msra.mxu0 %v19
  %464 = vmatpush.msra.mxu0 %v18
  %465 = vmatmul.f32.gmra.mxu0 %v447
  %v466 = vpop.f32.mrf.mxu0
  %v467 = vadd.f32 0.0, %v466
  %468 = vdwg.mxu0
  %v469 = vadd.f32 %v375, %v467
  %v470 = vxor.u32 %v469, 2147483648
  %v471 = vmul.f32 %v470, 1.442695
  %v472 = vpow.pop %v471
  %v473 = vadd.f32 %v472, 1.0
  %v474 = vrcp.pop %v473
  %v475 = vmul.f32 %v473, %v474
  %v476 = vsub.f32 1.0, %v475
  %v477 = vmul.f32 %v474, %v476
  %v478 = vadd.f32 %v474, %v477
  %vm479 = vweird.f32 %v473
  %vm480 = vweird.f32 %v474
  %vm481 = vmor %vm479, %vm480
  %v482 = vsel %vm481, %v474, %v478
  %v483 = vand.u32 2147483647, %v473
  %vm484 = vcmp.eq.f32.partialorder %v483, 8.507059e+37
  %v485 = vand.u32 %v473, 2147483648
  %v486 = vor.u32 1.1754944e-38, %v485
  %v487 = vsel %vm484, %v486, %v482
  %v488 = vmul.f32 1.0, %v487
  %v489 = vtanh.pop %v469
  %v490 = vmul.f32 %v488, %v437
  %492 = vrot.lane.b32.xlu0 %v489, 64
  %v493 = vpop.permute.xlu0 %492
  %v495 = vmul.f32 %v488, %v493
  %497 = vrot.lane.b32.xlu0 %v495, 32
  %v498 = vpop.permute.xlu0 %497
  %v500 = vadd.f32 %v490, %v498
  %v501 = vtanh.pop %v500
  %503 = vrot.lane.b32.xlu0 %v501, 64
  %v504 = vpop.permute.xlu0 %503
  %v506 = vmul.f32 %v488, %v504
  %508 = vrot.lane.b32.xlu0 %v506, 32
  %v509 = vpop.permute.xlu0 %508
  %v510 = vsel %vm68, %v509, 0
  %512 = vmatpush.msra.mxu0 0.0
  %513 = vmatpush.msra.mxu0 0.0
  %514 = vmatpush.msra.mxu0 0.0
  %515 = vmatpush.msra.mxu0 0.0
  %516 = vmatpush.msra.mxu0 0.0
  %517 = vmatpush.msra.mxu0 0.0
  %518 = vmatpush.msra.mxu0 0.0
  %519 = vmatpush.msra.mxu0 0.0
  %520 = vmatpush.msra.mxu0 0.0
  %521 = vmatpush.msra.mxu0 0.0
  %522 = vmatpush.msra.mxu0 0.0
  %523 = vmatpush.msra.mxu0 0.0
  %524 = vmatpush.msra.mxu0 %v21
  %525 = vmatpush.msra.mxu0 %v20
  %526 = vmatpush.msra.mxu0 %v19
  %527 = vmatpush.msra.mxu0 %v18
  %528 = vmatmul.f32.gmra.mxu0 %v510
  %v529 = vpop.f32.mrf.mxu0
  %v530 = vadd.f32 0.0, %v529
  %531 = vdwg.mxu0
  %v532 = vadd.f32 %v378, %v530
  %v533 = vxor.u32 %v532, 2147483648
  %v534 = vmul.f32 %v533, 1.442695
  %v535 = vpow.pop %v534
  %v536 = vadd.f32 %v535, 1.0
  %v537 = vrcp.pop %v536
  %v538 = vmul.f32 %v536, %v537
  %v539 = vsub.f32 1.0, %v538
  %v540 = vmul.f32 %v537, %v539
  %v541 = vadd.f32 %v537, %v540
  %vm542 = vweird.f32 %v536
  %vm543 = vweird.f32 %v537
  %vm544 = vmor %vm542, %vm543
  %v545 = vsel %vm544, %v537, %v541
  %v546 = vand.u32 2147483647, %v536
  %vm547 = vcmp.eq.f32.partialorder %v546, 8.507059e+37
  %v548 = vand.u32 %v536, 2147483648
  %v549 = vor.u32 1.1754944e-38, %v548
  %v550 = vsel %vm547, %v549, %v545
  %v551 = vmul.f32 1.0, %v550
  %v552 = vtanh.pop %v532
  %v553 = vmul.f32 %v551, %v500
  %555 = vrot.lane.b32.xlu0 %v552, 64
  %v556 = vpop.permute.xlu0 %555
  %v558 = vmul.f32 %v551, %v556
  %560 = vrot.lane.b32.xlu0 %v558, 32
  %v561 = vpop.permute.xlu0 %560
  %v563 = vadd.f32 %v553, %v561
  %v564 = vtanh.pop %v563
  %566 = vrot.lane.b32.xlu0 %v564, 64
  %v567 = vpop.permute.xlu0 %566
  %v569 = vmul.f32 %v551, %v567
  %571 = vrot.lane.b32.xlu0 %v569, 32
  %v572 = vpop.permute.xlu0 %571
  %v573 = vsel %vm68, %v572, 0
  %575 = vmatpush.msra.mxu0 0.0
  %576 = vmatpush.msra.mxu0 0.0
  %577 = vmatpush.msra.mxu0 0.0
  %578 = vmatpush.msra.mxu0 0.0
  %579 = vmatpush.msra.mxu0 0.0
  %580 = vmatpush.msra.mxu0 0.0
  %581 = vmatpush.msra.mxu0 0.0
  %582 = vmatpush.msra.mxu0 0.0
  %583 = vmatpush.msra.mxu0 0.0
  %584 = vmatpush.msra.mxu0 0.0
  %585 = vmatpush.msra.mxu0 0.0
  %586 = vmatpush.msra.mxu0 0.0
  %587 = vmatpush.msra.mxu0 %v21
  %588 = vmatpush.msra.mxu0 %v20
  %589 = vmatpush.msra.mxu0 %v19
  %590 = vmatpush.msra.mxu0 %v18
  %591 = vmatmul.f32.gmra.mxu0 %v573
  %v592 = vpop.f32.mrf.mxu0
  %v593 = vadd.f32 0.0, %v592
  %594 = vdwg.mxu0
  %v595 = vadd.f32 %v381, %v593
  %v596 = vxor.u32 %v595, 2147483648
  %v597 = vmul.f32 %v596, 1.442695
  %v598 = vpow.pop %v597
  %v599 = vadd.f32 %v598, 1.0
  %v600 = vrcp.pop %v599
  %v601 = vmul.f32 %v599, %v600
  %v602 = vsub.f32 1.0, %v601
  %v603 = vmul.f32 %v600, %v602
  %v604 = vadd.f32 %v600, %v603
  %vm605 = vweird.f32 %v599
  %vm606 = vweird.f32 %v600
  %vm607 = vmor %vm605, %vm606
  %v608 = vsel %vm607, %v600, %v604
  %v609 = vand.u32 2147483647, %v599
  %vm610 = vcmp.eq.f32.partialorder %v609, 8.507059e+37
  %v611 = vand.u32 %v599, 2147483648
  %v612 = vor.u32 1.1754944e-38, %v611
  %v613 = vsel %vm610, %v612, %v608
  %v614 = vmul.f32 1.0, %v613
  %v615 = vtanh.pop %v595
  %v616 = vmul.f32 %v614, %v563
  %618 = vrot.lane.b32.xlu0 %v615, 64
  %v619 = vpop.permute.xlu0 %618
  %v621 = vmul.f32 %v614, %v619
  %623 = vrot.lane.b32.xlu0 %v621, 32
  %v624 = vpop.permute.xlu0 %623
  %v626 = vadd.f32 %v616, %v624
  %v627 = vtanh.pop %v626
  %629 = vrot.lane.b32.xlu0 %v627, 64
  %v630 = vpop.permute.xlu0 %629
  %v632 = vmul.f32 %v614, %v630
  %v633 = vperm.slane %v31, 0
  %635 = vrot.lane.b32.xlu0 %v632, 32
  %v636 = vpop.permute.xlu0 %635
  %v637 = vsel %vm68, %v636, 0
  %639 = vmatpush.msra.mxu0 0.0
  %640 = vmatpush.msra.mxu0 0.0
  %641 = vmatpush.msra.mxu0 0.0
  %642 = vmatpush.msra.mxu0 0.0
  %643 = vmatpush.msra.mxu0 0.0
  %644 = vmatpush.msra.mxu0 0.0
  %645 = vmatpush.msra.mxu0 0.0
  %646 = vmatpush.msra.mxu0 0.0
  %647 = vmatpush.msra.mxu0 0.0
  %648 = vmatpush.msra.mxu0 0.0
  %649 = vmatpush.msra.mxu0 0.0
  %650 = vmatpush.msra.mxu0 0.0
  %651 = vmatpush.msra.mxu0 %v25
  %652 = vmatpush.msra.mxu0 %v24
  %653 = vmatpush.msra.mxu0 %v23
  %654 = vmatpush.msra.mxu0 %v22
  %655 = vmatmul.f32.gmra.mxu0 %v637
  %v656 = vpop.f32.mrf.mxu0
  %v657 = vadd.f32 %v633, %v656
  %658 = vdwg.mxu0
  %659 = vst [vmem:[%s3] sm:$0xff] %v657
  // Predicated region
  $region14: #{combine_forward.1} parent=0 // pred_check
    _
  $region15: #{combine_forward.1} parent=0 // pred_check_branch
    %661 = sbr.rel (0) target = $region17
  $region16: #{combine_forward.1} parent=0 // pred_region
    _
  $region17: #{combine_forward.1} parent=0 // pred_fallthru
    _
  // Predicated region
  $region18: #{combine_forward.1} parent=0 // pred_check
    _
  $region19: #{combine_forward.1} parent=0 // pred_check_branch
    %663 = sbr.rel (0) target = $region21
  $region20: #{combine_forward.1} parent=0 // pred_region
    _
  $region21: #{combine_forward.1} parent=0 // pred_fallthru
    _

</llo_original>
